<compile_context>
chip_gen: v5e
topology: v5e:2x2
jax: 0.10.0
libtpu: 0.0.40
codegen_flags: <defaults>
</compile_context>

<pallas_src>
import functools

import numpy as np
import jax
import jax.numpy as jnp
from jax.experimental import pallas as pl
from jax.experimental.pallas import tpu as pltpu


def _cdiv(a, b):
    return (a + b - 1) // b


def _round_up(n, m):
    return ((n + m - 1) // m) * m


def _mlp_kernel(x_ref, w1_ref, b1_ref, w2_ref, b2_ref, w3_ref, b3_ref, o_ref):
    # In-kernel cast of the streamed x tile to the matmul dtype (bf16 by
    # default).  This replaces a separate XLA pad+cast pass over x in HBM.
    x = x_ref[...].astype(w1_ref.dtype)
    # Layer 1: (TM, 29) @ (29, 128) -> f32 accumulate on the MXU.
    h1 = jnp.dot(x, w1_ref[...], preferred_element_type=jnp.float32)
    h1 = jnp.maximum(h1 + b1_ref[...], 0.0)
    # Layer 2: (TM, 128) @ (128, 128)
    h2 = jnp.dot(h1.astype(w2_ref.dtype), w2_ref[...],
                 preferred_element_type=jnp.float32)
    h2 = jnp.maximum(h2 + b2_ref[...], 0.0)
    # Layer 3: (TM, 128) @ (128, 8); final ReLU per the PyTorch forward.
    h3 = jnp.dot(h2.astype(w3_ref.dtype), w3_ref[...],
                 preferred_element_type=jnp.float32)
    o_ref[...] = jnp.maximum(h3 + b3_ref[...], 0.0).astype(o_ref.dtype)


def prepare_params(params, *, use_bf16=True):
    """One-time dtype/layout prep, hoisted out of the per-call forward path.

    Weights -> bf16 (MXU-native) by default; biases stay f32 so the
    elementwise epilogue runs in f32 on every generation.
    """
    w1, b1, w2, b2, w3, b3 = params
    mm = jnp.bfloat16 if use_bf16 else jnp.float32
    as_row = lambda b: jnp.asarray(b, jnp.float32).reshape(1, -1)
    return (jnp.asarray(w1, mm), as_row(b1),
            jnp.asarray(w2, mm), as_row(b2),
            jnp.asarray(w3, mm), as_row(b3))


@functools.partial(jax.jit, static_argnames=("tm", "out_dtype"))
def policy_dev_forward(x, prepared_params, *, tm=4096, out_dtype=jnp.bfloat16):
    """x: (B, state_dim) f32 (or bf16) -> (B, 8) in `out_dtype`."""
    w1, b1, w2, b2, w3, b3 = prepared_params
    B, state_dim = x.shape
    hidden = w1.shape[1]
    out_dim = w3.shape[1]

    # --- batch tiling ------------------------------------------------------
    # Number of grid steps first (>= 2 once B is large enough so v7x's two
    # TensorCores both get work on the "parallel" axis), then a balanced tile
    # rounded to 16 rows (bf16-friendly sublane count).  Padding is bounded to
    # < 16 rows per tile.
    min_grid = 2 if B >= 16 else 1
    grid_b = max(min_grid, _cdiv(B, tm))
    tm_eff = _round_up(_cdiv(B, grid_b), 16)
    b_pad = grid_b * tm_eff
    if b_pad != B:
        x = jnp.pad(x, ((0, b_pad - B), (0, 0)))

    # --- specs ---------------------------------------------------------------
    # x / out stream through the auto double-buffered pipeline; weights &
    # biases are full blocks with a constant index_map, so they stay
    # VMEM-resident and are never re-fetched across grid steps.
    pinned = lambda shape: pl.BlockSpec(shape, lambda i: (0, 0))
    in_specs = [
        pl.BlockSpec((tm_eff, state_dim), lambda i: (i, 0)),   # x tile (streamed)
        pinned((state_dim, hidden)),                            # W1
        pinned((1, hidden)),                                    # b1
        pinned((hidden, hidden)),                               # W2
        pinned((1, hidden)),                                    # b2
        pinned((hidden, out_dim)),                              # W3
        pinned((1, out_dim)),                                   # b3
    ]
    out_specs = pl.BlockSpec((tm_eff, out_dim), lambda i: (i, 0))

    flops = 2 * b_pad * (state_dim * hidden + hidden * hidden + hidden * out_dim)
    bytes_accessed = int(
        b_pad * state_dim * x.dtype.itemsize
        + sum(a.size * a.dtype.itemsize for a in (w1, b1, w2, b2, w3, b3))
        + b_pad * out_dim * np.dtype(out_dtype).itemsize
    )

    out = pl.pallas_call(
        _mlp_kernel,
        out_shape=jax.ShapeDtypeStruct((b_pad, out_dim), out_dtype),
        grid_spec=pltpu.PrefetchScalarGridSpec(
            num_scalar_prefetch=0,
            grid=(grid_b,),
            in_specs=in_specs,
            out_specs=out_specs,
        ),
        compiler_params=pltpu.CompilerParams(
            # Batch axis is independent -> shard across v7x's 2 TCs; no-op on
            # single-TC chips.
            dimension_semantics=("parallel",),
        ),
        cost_estimate=pl.CostEstimate(
            flops=flops, transcendentals=0, bytes_accessed=bytes_accessed
        ),
    )(x, w1, b1, w2, b2, w3, b3)

    # Padded rows compute relu(bias) garbage; slice them off (do not remove).
    return out[:B]


def init_params(key, state_dim):
    """Deterministic init mimicking nn.Linear's U(-1/sqrt(fan_in), 1/sqrt(fan_in))."""
    dims = [(state_dim, 128), (128, 128), (128, 8)]
    params = []
    for i, (fan_in, fan_out) in enumerate(dims):
        kw, kb = jax.random.split(jax.random.fold_in(key, i))
        bound = 1.0 / jnp.sqrt(jnp.float32(fan_in))
        w = jax.random.uniform(kw, (fan_in, fan_out), jnp.float32, -bound, bound)
        b = jax.random.uniform(kb, (1, fan_out), jnp.float32, -bound, bound)
        params += [w, b]
    return tuple(params)


def _reference_f32(x, params):
    """Plain-JAX f32 forward matching the PyTorch module."""
    w1, b1, w2, b2, w3, b3 = params
    h = jnp.maximum(x @ w1 + b1, 0.0)
    h = jnp.maximum(h @ w2 + b2, 0.0)
    h = jnp.maximum(h @ w3 + b3, 0.0)
    return h


if __name__ == "__main__":
    # state_dim for the Ant-with-goal model: len(qpos) + len(qvel) = 15 + 14 = 29.
    state_dim = 29
    key = jax.random.PRNGKey(0)
    k_x, k_p, k_x2 = jax.random.split(key, 3)
    params = init_params(k_p, state_dim)

    # One-time param prep (hoisted out of the repeated-inference path).
    params_bf16 = prepare_params(params, use_bf16=True)
    params_f32 = prepare_params(params, use_bf16=False)

    # Small batch: single grid step, tile shrinks to 16 rows.
    batch = 4
    x = jax.random.normal(k_x, (batch, state_dim), dtype=jnp.float32)
    ref = _reference_f32(x, params)

    out = jax.block_until_ready(policy_dev_forward(x, params_bf16))
    assert out.shape == (batch, 8) and out.dtype == jnp.bfloat16
    err = float(jnp.max(jnp.abs(out.astype(jnp.float32) - ref)))
    assert err < 5e-2, err

    # f32 mode: close parity with the true f32 PyTorch module.
    out_f32 = jax.block_until_ready(
        policy_dev_forward(x, params_f32, out_dtype=jnp.float32))
    assert out_f32.shape == (batch, 8) and out_f32.dtype == jnp.float32
    err = float(jnp.max(jnp.abs(out_f32 - ref)))
    assert err < 2e-2, err

    # Larger batch: exercises grid_b >= 2 (megacore-parallel axis) and the
    # rebalanced tiling (B=1000 -> 2 tiles of 512 rows, only 24 padded rows).
    big_batch = 1000
    x2 = jax.random.normal(k_x2, (big_batch, state_dim), dtype=jnp.float32)
    ref2 = _reference_f32(x2, params)
    out2 = jax.block_until_ready(policy_dev_forward(x2, params_bf16))
    assert out2.shape == (big_batch, 8)
    err = float(jnp.max(jnp.abs(out2.astype(jnp.float32) - ref2)))
    assert err < 5e-2, err

    print("KERNEL_OK")
</pallas_src>

<mosaic_0001>
module attributes {stable_mosaic.version = 11 : i64} {
  func.func @_mlp_kernel(%arg0: i32, %arg1: memref<16x29xf32, #tpu.memory_space<vmem>>, %arg2: memref<29x128xbf16, #tpu.memory_space<vmem>>, %arg3: memref<1x128xf32, #tpu.memory_space<vmem>>, %arg4: memref<128x128xbf16, #tpu.memory_space<vmem>>, %arg5: memref<1x128xf32, #tpu.memory_space<vmem>>, %arg6: memref<128x8xbf16, #tpu.memory_space<vmem>>, %arg7: memref<1x8xf32, #tpu.memory_space<vmem>>, %arg8: memref<16x8xbf16, #tpu.memory_space<vmem>>) attributes {dimension_semantics = [#tpu.dimension_semantics<parallel>], iteration_bounds = array<i64: 1>, scalar_prefetch = 0 : i64, scratch_operands = 0 : i64, tpu.core_type = #tpu.core_type<tc>, window_params = [{transform_indices = @transform_0, window_bounds = array<i64: 16, 29>}, {pipeline_mode = #tpu.pipeline_mode<synchronous>, transform_indices = @transform_1, window_bounds = array<i64: 29, 128>}, {pipeline_mode = #tpu.pipeline_mode<synchronous>, transform_indices = @transform_2, window_bounds = array<i64: 1, 128>}, {pipeline_mode = #tpu.pipeline_mode<synchronous>, transform_indices = @transform_3, window_bounds = array<i64: 128, 128>}, {pipeline_mode = #tpu.pipeline_mode<synchronous>, transform_indices = @transform_4, window_bounds = array<i64: 1, 128>}, {pipeline_mode = #tpu.pipeline_mode<synchronous>, transform_indices = @transform_5, window_bounds = array<i64: 128, 8>}, {pipeline_mode = #tpu.pipeline_mode<synchronous>, transform_indices = @transform_6, window_bounds = array<i64: 1, 8>}, {transform_indices = @transform_7, window_bounds = array<i64: 16, 8>}]} {
    %c0 = arith.constant 0 : index
    %c0_0 = arith.constant 0 : index
    %0 = vector.load %arg1[%c0, %c0_0] : memref<16x29xf32, #tpu.memory_space<vmem>>, vector<16x29xf32>
    %1 = arith.truncf %0 : vector<16x29xf32> to vector<16x29xbf16>
    %c0_1 = arith.constant 0 : index
    %c0_2 = arith.constant 0 : index
    %2 = vector.load %arg2[%c0_1, %c0_2] : memref<29x128xbf16, #tpu.memory_space<vmem>>, vector<29x128xbf16>
    %cst = arith.constant dense<0.000000e+00> : vector<16x128xf32>
    %3 = tpu.matmul %1, %2, %cst {dimension_numbers = #tpu.dot_dimension_numbers<[1], [0], [0], [1], [0, 0, 1, 1], [], []>} : vector<16x29xbf16>, vector<29x128xbf16>, vector<16x128xf32> -> vector<16x128xf32>
    %c0_3 = arith.constant 0 : index
    %c0_4 = arith.constant 0 : index
    %4 = vector.load %arg3[%c0_3, %c0_4] : memref<1x128xf32, #tpu.memory_space<vmem>>, vector<1x128xf32>
    %5 = vector.broadcast %4 : vector<1x128xf32> to vector<16x128xf32>
    %6 = arith.addf %3, %5 : vector<16x128xf32>
    %cst_5 = arith.constant 0.000000e+00 : f32
    %7 = vector.broadcast %cst_5 : f32 to vector<16x128xf32>
    %8 = arith.maximumf %6, %7 : vector<16x128xf32>
    %9 = arith.truncf %8 : vector<16x128xf32> to vector<16x128xbf16>
    %c0_6 = arith.constant 0 : index
    %c0_7 = arith.constant 0 : index
    %10 = vector.load %arg4[%c0_6, %c0_7] : memref<128x128xbf16, #tpu.memory_space<vmem>>, vector<128x128xbf16>
    %cst_8 = arith.constant dense<0.000000e+00> : vector<16x128xf32>
    %11 = tpu.matmul %9, %10, %cst_8 {dimension_numbers = #tpu.dot_dimension_numbers<[1], [0], [0], [1], [0, 0, 1, 1], [], []>} : vector<16x128xbf16>, vector<128x128xbf16>, vector<16x128xf32> -> vector<16x128xf32>
    %c0_9 = arith.constant 0 : index
    %c0_10 = arith.constant 0 : index
    %12 = vector.load %arg5[%c0_9, %c0_10] : memref<1x128xf32, #tpu.memory_space<vmem>>, vector<1x128xf32>
    %13 = vector.broadcast %12 : vector<1x128xf32> to vector<16x128xf32>
    %14 = arith.addf %11, %13 : vector<16x128xf32>
    %cst_11 = arith.constant 0.000000e+00 : f32
    %15 = vector.broadcast %cst_11 : f32 to vector<16x128xf32>
    %16 = arith.maximumf %14, %15 : vector<16x128xf32>
    %17 = arith.truncf %16 : vector<16x128xf32> to vector<16x128xbf16>
    %c0_12 = arith.constant 0 : index
    %c0_13 = arith.constant 0 : index
    %18 = vector.load %arg6[%c0_12, %c0_13] : memref<128x8xbf16, #tpu.memory_space<vmem>>, vector<128x8xbf16>
    %cst_14 = arith.constant dense<0.000000e+00> : vector<16x8xf32>
    %19 = tpu.matmul %17, %18, %cst_14 {dimension_numbers = #tpu.dot_dimension_numbers<[1], [0], [0], [1], [0, 0, 1, 1], [], []>} : vector<16x128xbf16>, vector<128x8xbf16>, vector<16x8xf32> -> vector<16x8xf32>
    %c0_15 = arith.constant 0 : index
    %c0_16 = arith.constant 0 : index
    %20 = vector.load %arg7[%c0_15, %c0_16] : memref<1x8xf32, #tpu.memory_space<vmem>>, vector<1x8xf32>
    %21 = vector.broadcast %20 : vector<1x8xf32> to vector<16x8xf32>
    %22 = arith.addf %19, %21 : vector<16x8xf32>
    %cst_17 = arith.constant 0.000000e+00 : f32
    %23 = vector.broadcast %cst_17 : f32 to vector<16x8xf32>
    %24 = arith.maximumf %22, %23 : vector<16x8xf32>
    %25 = arith.truncf %24 : vector<16x8xf32> to vector<16x8xbf16>
    %c0_18 = arith.constant 0 : index
    %c0_19 = arith.constant 0 : index
    %26 = vector.load %arg8[%c0_18, %c0_19] : memref<16x8xbf16, #tpu.memory_space<vmem>>, vector<16x8xbf16>
    tpu.vector_store %arg8[%c0_18, %c0_19], %25 {strides = array<i32>} : memref<16x8xbf16, #tpu.memory_space<vmem>>, vector<16x8xbf16>,
    return
  }
  func.func @transform_0(%arg0: i32) -> (i32, i32) {
    %c0_i32 = arith.constant 0 : i32
    %c0_i32_0 = arith.constant 0 : i32
    return %arg0, %c0_i32 : i32, i32
  }
  func.func @transform_1(%arg0: i32) -> (i32, i32) {
    %c0_i32 = arith.constant 0 : i32
    %c0_i32_0 = arith.constant 0 : i32
    %c0_i32_1 = arith.constant 0 : i32
    return %c0_i32, %c0_i32_0 : i32, i32
  }
  func.func @transform_2(%arg0: i32) -> (i32, i32) {
    %c0_i32 = arith.constant 0 : i32
    %c0_i32_0 = arith.constant 0 : i32
    %c0_i32_1 = arith.constant 0 : i32
    return %c0_i32, %c0_i32_0 : i32, i32
  }
  func.func @transform_3(%arg0: i32) -> (i32, i32) {
    %c0_i32 = arith.constant 0 : i32
    %c0_i32_0 = arith.constant 0 : i32
    %c0_i32_1 = arith.constant 0 : i32
    return %c0_i32, %c0_i32_0 : i32, i32
  }
  func.func @transform_4(%arg0: i32) -> (i32, i32) {
    %c0_i32 = arith.constant 0 : i32
    %c0_i32_0 = arith.constant 0 : i32
    %c0_i32_1 = arith.constant 0 : i32
    return %c0_i32, %c0_i32_0 : i32, i32
  }
  func.func @transform_5(%arg0: i32) -> (i32, i32) {
    %c0_i32 = arith.constant 0 : i32
    %c0_i32_0 = arith.constant 0 : i32
    %c0_i32_1 = arith.constant 0 : i32
    return %c0_i32, %c0_i32_0 : i32, i32
  }
  func.func @transform_6(%arg0: i32) -> (i32, i32) {
    %c0_i32 = arith.constant 0 : i32
    %c0_i32_0 = arith.constant 0 : i32
    %c0_i32_1 = arith.constant 0 : i32
    return %c0_i32, %c0_i32_0 : i32, i32
  }
  func.func @transform_7(%arg0: i32) -> (i32, i32) {
    %c0_i32 = arith.constant 0 : i32
    %c0_i32_0 = arith.constant 0 : i32
    return %arg0, %c0_i32 : i32, i32
  }
}

</mosaic_0001>

<llo_original>
// kernel: policy_dev_forward.1
$region0: #{policy_dev_forward.1}
  #allocation0 [shape = 'u32[]', space=smem, size = 0x4, offset = 0x4, fixed_abs, tag = 'smem constant byte address 0x4 - core index']
  #allocation1 [shape = 'u32[72,128]{1,0:T(1,128)}', space=vmem, size = 0x9000, scoped, tag = 'internal scratch']
  %s0 = inlined_call_operand.vmem [shape: f32[16,29], index: 0, kind: input, shape index: {}]
  %s1 = inlined_call_operand.vmem [shape: bf16[29,128], index: 1, kind: input, shape index: {}]
  %s2 = inlined_call_operand.vmem [shape: f32[1,128], index: 2, kind: input, shape index: {}]
  %s3 = inlined_call_operand.vmem [shape: bf16[128,128], index: 3, kind: input, shape index: {}]
  %s4 = inlined_call_operand.vmem [shape: f32[1,128], index: 4, kind: input, shape index: {}]
  %s5 = inlined_call_operand.vmem [shape: bf16[128,8], index: 5, kind: input, shape index: {}]
  %s6 = inlined_call_operand.vmem [shape: f32[1,8], index: 6, kind: input, shape index: {}]
  %s7 = inlined_call_operand.vmem [shape: bf16[16,8], index: 7, kind: output, shape index: {}]
  %s8 = sld [smem:[#allocation0]]
  $region38: #{policy_dev_forward.1} parent=0
    _
  %s10 = ssub.s32 1, %s8
  %s11 = scalar_select 0, %s10, %s8
  // Predicated region
  $region2: #{policy_dev_forward.1} parent=0 // pred_check
    _
  $region3: #{policy_dev_forward.1} parent=0 // pred_check_branch
    %13 = sbr.rel (0) target = $region5
  $region4: #{policy_dev_forward.1} parent=0 // pred_region
    _
  $region5: #{policy_dev_forward.1} parent=0 // pred_fallthru
    _
  // Predicated region
  $region6: #{policy_dev_forward.1} parent=0 // pred_check
    _
  $region7: #{policy_dev_forward.1} parent=0 // pred_check_branch
    %15 = sbr.rel (0) target = $region9
  $region8: #{policy_dev_forward.1} parent=0 // pred_region
    _
  $region9: #{policy_dev_forward.1} parent=0 // pred_fallthru
    _
  // Predicated region
  $region10: #{policy_dev_forward.1} parent=0 // pred_check
    _
  $region11: #{policy_dev_forward.1} parent=0 // pred_check_branch
    %17 = sbr.rel (0) target = $region13
  $region12: #{policy_dev_forward.1} parent=0 // pred_region
    _
  $region13: #{policy_dev_forward.1} parent=0 // pred_fallthru
    _
  // Predicated region
  $region14: #{policy_dev_forward.1} parent=0 // pred_check
    _
  $region15: #{policy_dev_forward.1} parent=0 // pred_check_branch
    %19 = sbr.rel (0) target = $region17
  $region16: #{policy_dev_forward.1} parent=0 // pred_region
    _
  $region17: #{policy_dev_forward.1} parent=0 // pred_fallthru
    _
  // Predicated region
  $region18: #{policy_dev_forward.1} parent=0 // pred_check
    _
  $region19: #{policy_dev_forward.1} parent=0 // pred_check_branch
    %21 = sbr.rel (0) target = $region21
  $region20: #{policy_dev_forward.1} parent=0 // pred_region
    _
  $region21: #{policy_dev_forward.1} parent=0 // pred_fallthru
    _
  // Predicated region
  $region22: #{policy_dev_forward.1} parent=0 // pred_check
    _
  $region23: #{policy_dev_forward.1} parent=0 // pred_check_branch
    %23 = sbr.rel (0) target = $region25
  $region24: #{policy_dev_forward.1} parent=0 // pred_region
    _
  $region25: #{policy_dev_forward.1} parent=0 // pred_fallthru
    _
  // Predicated region
  $region26: #{policy_dev_forward.1} parent=0 // pred_check
    _
  $region27: #{policy_dev_forward.1} parent=0 // pred_check_branch
    %25 = sbr.rel (0) target = $region29
  $region28: #{policy_dev_forward.1} parent=0 // pred_region
    _
  $region29: #{policy_dev_forward.1} parent=0 // pred_fallthru
    _
  %v27 = vld [vmem:[%s0] sm:$0xff]
  %v28 = vld [vmem:[%s0 + $0x8] sm:$0xff]
  %v29 = vpack.c.bf16 %v28, %v27
  %v30 = vld [vmem:[%s1] sm:$0xf]
  %v31 = vld [vmem:[%s1 + $0x4] sm:$0xf]
  %v32 = vld [vmem:[%s1 + $0x8] sm:$0xf]
  %v33 = vld [vmem:[%s1 + $0xc] sm:$0x7]
  %v34 = vld [vmem:[%s2] sm:$0x1]
  %v36 = vperm.slane %v34, 0
  %v42 = vunpack.c.l.b16 %v30
  %v43 = vunpack.c.l.b16 %v31
  %v44 = vunpack.c.l.b16 %v32
  %v45 = vunpack.c.l.b16 %v33
  %v46 = vpack.c.b16 %v43, %v42
  %v47 = vpack.c.b16 %v45, %v44
  %vm49 = vcmask 236544
  %v51 = vsel %vm49, %v29, 0
  %vm53 = vcmask 1045504
  %vm54 = vcmask 1046528
  %v55 = vsel %vm53, 4294967295, 65535
  %v56 = vsel %vm54, %v55, 0
  %v58 = vand.u32 %v47, %v56
  %60 = vmatpush.bf16.msra.mxu0 0
  %61 = vmatpush.bf16.msra.mxu0 0
  %62 = vmatpush.bf16.msra.mxu0 0
  %63 = vmatpush.bf16.msra.mxu0 0
  %64 = vmatpush.bf16.msra.mxu0 0
  %65 = vmatpush.bf16.msra.mxu0 0
  %66 = vmatpush.bf16.msra.mxu0 %v58
  %67 = vmatpush.bf16.msra.mxu0 %v46
  %68 = vmatmul.bf16.gmra.mxu0 %v51
  %v69 = vpop.f32.mrf.mxu0
  %v70 = vadd.f32 %v36, %v69
  %v71 = vpop.f32.mrf.mxu0
  %v72 = vadd.f32 %v36, %v71
  %73 = vdwg.mxu0
  %v74 = vmax.f32 %v70, 0.0
  %v75 = vmax.f32 %v72, 0.0
  %v76 = vpack.c.bf16 %v75, %v74
  %v77 = vld [vmem:[%s3] sm:$0xf]
  %v78 = vld [vmem:[%s3 + $0x4] sm:$0xf]
  %v79 = vld [vmem:[%s3 + $0x8] sm:$0xf]
  %v80 = vld [vmem:[%s3 + $0xc] sm:$0xf]
  %v81 = vld [vmem:[%s3 + $0x10] sm:$0xf]
  %v82 = vld [vmem:[%s3 + $0x14] sm:$0xf]
  %v83 = vld [vmem:[%s3 + $0x18] sm:$0xf]
  %v84 = vld [vmem:[%s3 + $0x1c] sm:$0xf]
  %v85 = vld [vmem:[%s3 + $0x20] sm:$0xf]
  %v86 = vld [vmem:[%s3 + $0x24] sm:$0xf]
  %v87 = vld [vmem:[%s3 + $0x28] sm:$0xf]
  %v88 = vld [vmem:[%s3 + $0x2c] sm:$0xf]
  %v89 = vld [vmem:[%s3 + $0x30] sm:$0xf]
  %v90 = vld [vmem:[%s3 + $0x34] sm:$0xf]
  %v91 = vld [vmem:[%s3 + $0x38] sm:$0xf]
  %v92 = vld [vmem:[%s3 + $0x3c] sm:$0xf]
  %v93 = vld [vmem:[%s4] sm:$0x1]
  %v95 = vperm.slane %v93, 0
  %v113 = vunpack.c.l.b16 %v77
  %v114 = vunpack.c.l.b16 %v78
  %v115 = vunpack.c.l.b16 %v79
  %v116 = vunpack.c.l.b16 %v80
  %v117 = vunpack.c.l.b16 %v81
  %v118 = vunpack.c.l.b16 %v82
  %v119 = vunpack.c.l.b16 %v83
  %v120 = vunpack.c.l.b16 %v84
  %v121 = vunpack.c.l.b16 %v85
  %v122 = vunpack.c.l.b16 %v86
  %v123 = vunpack.c.l.b16 %v87
  %v124 = vunpack.c.l.b16 %v88
  %v125 = vunpack.c.l.b16 %v89
  %v126 = vunpack.c.l.b16 %v90
  %v127 = vunpack.c.l.b16 %v91
  %v128 = vunpack.c.l.b16 %v92
  %v129 = vpack.c.b16 %v114, %v113
  %v130 = vpack.c.b16 %v116, %v115
  %v131 = vpack.c.b16 %v118, %v117
  %v132 = vpack.c.b16 %v120, %v119
  %v133 = vpack.c.b16 %v122, %v121
  %v134 = vpack.c.b16 %v124, %v123
  %v135 = vpack.c.b16 %v126, %v125
  %v136 = vpack.c.b16 %v128, %v127
  %145 = vmatpush.bf16.msra.mxu0 %v136
  %146 = vmatpush.bf16.msra.mxu0 %v135
  %147 = vmatpush.bf16.msra.mxu0 %v134
  %148 = vmatpush.bf16.msra.mxu0 %v133
  %149 = vmatpush.bf16.msra.mxu0 %v132
  %150 = vmatpush.bf16.msra.mxu0 %v131
  %151 = vmatpush.bf16.msra.mxu0 %v130
  %152 = vmatpush.bf16.msra.mxu0 %v129
  %153 = vmatmul.bf16.gmra.mxu0 %v76
  %v154 = vpop.f32.mrf.mxu0
  %v155 = vadd.f32 %v95, %v154
  %v156 = vpop.f32.mrf.mxu0
  %v157 = vadd.f32 %v95, %v156
  %158 = vdwg.mxu0
  %v159 = vmax.f32 %v155, 0.0
  %v160 = vmax.f32 %v157, 0.0
  %v161 = vpack.c.bf16 %v160, %v159
  %v162 = vld [vmem:[%s5] sm:$0xf]
  %v163 = vld [vmem:[%s5 + $0x4] sm:$0xf]
  %v164 = vld [vmem:[%s5 + $0x8] sm:$0xf]
  %v165 = vld [vmem:[%s5 + $0xc] sm:$0xf]
  %v166 = vld [vmem:[%s5 + $0x10] sm:$0xf]
  %v167 = vld [vmem:[%s5 + $0x14] sm:$0xf]
  %v168 = vld [vmem:[%s5 + $0x18] sm:$0xf]
  %v169 = vld [vmem:[%s5 + $0x1c] sm:$0xf]
  %v170 = vld [vmem:[%s5 + $0x20] sm:$0xf]
  %v171 = vld [vmem:[%s5 + $0x24] sm:$0xf]
  %v172 = vld [vmem:[%s5 + $0x28] sm:$0xf]
  %v173 = vld [vmem:[%s5 + $0x2c] sm:$0xf]
  %v174 = vld [vmem:[%s5 + $0x30] sm:$0xf]
  %v175 = vld [vmem:[%s5 + $0x34] sm:$0xf]
  %v176 = vld [vmem:[%s5 + $0x38] sm:$0xf]
  %v177 = vld [vmem:[%s5 + $0x3c] sm:$0xf]
  %v178 = vld [vmem:[%s6] sm:$0x1]
  %v180 = vperm.slane %v178, 0
  %v198 = vunpack.c.l.b16 %v162
  %v199 = vunpack.c.l.b16 %v163
  %v200 = vunpack.c.l.b16 %v164
  %v201 = vunpack.c.l.b16 %v165
  %v202 = vunpack.c.l.b16 %v166
  %v203 = vunpack.c.l.b16 %v167
  %v204 = vunpack.c.l.b16 %v168
  %v205 = vunpack.c.l.b16 %v169
  %v206 = vunpack.c.l.b16 %v170
  %v207 = vunpack.c.l.b16 %v171
  %v208 = vunpack.c.l.b16 %v172
  %v209 = vunpack.c.l.b16 %v173
  %v210 = vunpack.c.l.b16 %v174
  %v211 = vunpack.c.l.b16 %v175
  %v212 = vunpack.c.l.b16 %v176
  %v213 = vunpack.c.l.b16 %v177
  %v214 = vpack.c.b16 %v199, %v198
  %v215 = vpack.c.b16 %v201, %v200
  %v216 = vpack.c.b16 %v203, %v202
  %v217 = vpack.c.b16 %v205, %v204
  %v218 = vpack.c.b16 %v207, %v206
  %v219 = vpack.c.b16 %v209, %v208
  %v220 = vpack.c.b16 %v211, %v210
  %v221 = vpack.c.b16 %v213, %v212
  %230 = vmatpush.bf16.msra.mxu0 %v221
  %231 = vmatpush.bf16.msra.mxu0 %v220
  %232 = vmatpush.bf16.msra.mxu0 %v219
  %233 = vmatpush.bf16.msra.mxu0 %v218
  %234 = vmatpush.bf16.msra.mxu0 %v217
  %235 = vmatpush.bf16.msra.mxu0 %v216
  %236 = vmatpush.bf16.msra.mxu0 %v215
  %237 = vmatpush.bf16.msra.mxu0 %v214
  %238 = vmatmul.bf16.gmra.mxu0 %v161
  %v239 = vpop.f32.mrf.mxu0
  %v240 = vadd.f32 %v180, %v239
  %v241 = vpop.f32.mrf.mxu0
  %v242 = vadd.f32 %v180, %v241
  %243 = vdwg.mxu0
  %v244 = vmax.f32 %v240, 0.0
  %v245 = vmax.f32 %v242, 0.0
  %v246 = vpack.c.bf16 %v244, %v244
  %v247 = vpack.c.bf16 %v245, %v245
  %vm248 = vcmask 60416
  %249 = vst.msk [vmem:[%s7] sm:$0xf] %vm248, %v246
  %250 = vst.msk [vmem:[%s7 + $0x4] sm:$0xf] %vm248, %v247
  // Predicated region
  $region30: #{policy_dev_forward.1} parent=0 // pred_check
    _
  $region31: #{policy_dev_forward.1} parent=0 // pred_check_branch
    %252 = sbr.rel (0) target = $region33
  $region32: #{policy_dev_forward.1} parent=0 // pred_region
    _
  $region33: #{policy_dev_forward.1} parent=0 // pred_fallthru
    _
  // Predicated region
  $region34: #{policy_dev_forward.1} parent=0 // pred_check
    _
  $region35: #{policy_dev_forward.1} parent=0 // pred_check_branch
    %254 = sbr.rel (0) target = $region37
  $region36: #{policy_dev_forward.1} parent=0 // pred_region
    _
  $region37: #{policy_dev_forward.1} parent=0 // pred_fallthru
    _

</llo_original>
